<compile_context>
chip_gen: v7x
topology: tpu7x:2x2x1
jax: 0.10.0
libtpu: 0.0.40
codegen_flags: <defaults>
</compile_context>

<pallas_src>
import functools

import jax
import jax.numpy as jnp
from jax.experimental import pallas as pl
from jax.experimental.pallas import tpu as pltpu


def _round_up(a, m):
    return ((a + m - 1) // m) * m


def _cond_linear_kernel(t_ref, x_ref, w_ref, bias_ref, emb_ref, o_ref):
    tile_b = x_ref.shape[0]
    s_pad = emb_ref.shape[0]

    # Vectorized embedding gather: one tiny MXU matmul instead of tile_b
    # serialized single-sublane copies.  one_hot: (tile_b, s_pad) f32.
    steps = jax.lax.broadcasted_iota(jnp.int32, (tile_b, s_pad), 1)
    one_hot = (t_ref[...] == steps).astype(jnp.float32)
    gamma = jnp.dot(one_hot, emb_ref[...], preferred_element_type=jnp.float32)

    # Main MXU matmul with f32 accumulation; bias add + gamma scale fused on the
    # VPU and stored directly (lane-dense, unmasked vst's).
    out = jnp.dot(x_ref[...], w_ref[...], preferred_element_type=jnp.float32)
    o_ref[...] = (gamma * (out + bias_ref[...])).astype(o_ref.dtype)


def prepare_params(lin_weight, lin_bias, embed_weight, matmul_dtype=jnp.float32):
    """One-time parameter prep (do at init, NOT per call): transpose the linear
    weight to (num_in, num_out) and pad the output dimension to a multiple of
    128 lanes.  matmul_dtype=jnp.bfloat16 halves weight/activation HBM bytes on
    all generations; bias and embedding stay f32 (elementwise path stays f32).
    Note the bf16 path also casts activations to bf16 (documented precision
    trade-off)."""
    num_out, num_in = lin_weight.shape
    n_steps = embed_weight.shape[0]
    n_pad = _round_up(num_out, 128)
    s_pad = _round_up(n_steps, 8)

    w_t_pad = jnp.pad(lin_weight.T.astype(matmul_dtype),
                      ((0, 0), (0, n_pad - num_out)))                  # (num_in, n_pad)
    bias_pad = jnp.pad(lin_bias.astype(jnp.float32).reshape(1, num_out),
                       ((0, 0), (0, n_pad - num_out)))                 # (1, n_pad)
    embed_pad = jnp.pad(embed_weight.astype(jnp.float32),
                        ((0, s_pad - n_steps), (0, n_pad - num_out)))  # (s_pad, n_pad)
    return w_t_pad, bias_pad, embed_pad


@functools.partial(jax.jit, static_argnames=("num_out", "out_dtype"))
def conditional_linear(x, t, w_t_pad, bias_pad, embed_pad, *, num_out,
                       out_dtype=jnp.float32):
    """x: (B, num_in); t: (B,) int; prepared params from prepare_params()."""
    B, num_in = x.shape
    n_pad = w_t_pad.shape[1]
    s_pad = embed_pad.shape[0]
    mm_dtype = w_t_pad.dtype

    # Batch tiling: big streaming tiles (multiple of 16 sublanes covers f32 and
    # bf16), capped at 512 rows.  If that collapses the grid to one step, halve
    # the tile so grid_b >= 2 and v7x can shard the batch across its 2 TCs.
    tile_b = min(512, _round_up(B, 16))
    if _round_up(B, tile_b) // tile_b < 2 and tile_b >= 32:
        tile_b = _round_up(tile_b // 2, 16)
    B_pad = _round_up(B, tile_b)
    grid_b = B_pad // tile_b

    x_p = jnp.pad(x.astype(mm_dtype), ((0, B_pad - B), (0, 0)))
    t_p = jnp.pad(t.astype(jnp.int32), (0, B_pad - B)).reshape(B_pad, 1)  # pad -> row 0

    mm_isize = mm_dtype.itemsize
    out_isize = jnp.dtype(out_dtype).itemsize

    # Double-buffered working set (resident blocks still double-buffered by
    # default; tiny at these shapes) + headroom.
    working_set = 2 * (tile_b * 4                      # t tile
                       + tile_b * num_in * mm_isize    # x tile
                       + num_in * n_pad * mm_isize     # W^T (resident)
                       + n_pad * 4                     # bias (resident)
                       + s_pad * n_pad * 4             # embedding table (resident)
                       + tile_b * n_pad * out_isize)   # output tile
    vmem_limit = int(min(48 << 20, max(4 << 20, 2 * working_set)))

    flops = (2 * B_pad * num_in * n_pad        # main matmul
             + 2 * B_pad * s_pad * n_pad       # one-hot gather matmul
             + 2 * B_pad * n_pad)              # bias + gamma scale
    bytes_accessed = (t_p.size * 4 + x_p.size * mm_isize
                      + w_t_pad.size * mm_isize + bias_pad.size * 4
                      + embed_pad.size * 4 + B_pad * n_pad * out_isize)

    out_padded = pl.pallas_call(
        _cond_linear_kernel,
        out_shape=jax.ShapeDtypeStruct((B_pad, n_pad), out_dtype),
        grid=(grid_b,),
        in_specs=[
            pl.BlockSpec((tile_b, 1), lambda i: (i, 0)),        # t      (streamed)
            pl.BlockSpec((tile_b, num_in), lambda i: (i, 0)),   # x      (streamed)
            pl.BlockSpec((num_in, n_pad), lambda i: (0, 0)),    # W^T    (resident)
            pl.BlockSpec((1, n_pad), lambda i: (0, 0)),         # bias   (resident)
            pl.BlockSpec((s_pad, n_pad), lambda i: (0, 0)),     # embed  (resident)
        ],
        out_specs=pl.BlockSpec((tile_b, n_pad), lambda i: (i, 0)),
        compiler_params=pltpu.CompilerParams(
            dimension_semantics=("parallel",),   # megacore-shardable batch axis
            vmem_limit_bytes=vmem_limit,
        ),
        cost_estimate=pl.CostEstimate(
            flops=flops, transcendentals=0, bytes_accessed=bytes_accessed),
    )(t_p, x_p, w_t_pad, bias_pad, embed_pad)

    # Only pay for a slice copy when padding actually happened.
    if B_pad != B or n_pad != num_out:
        return out_padded[:B, :num_out]
    return out_padded


if __name__ == "__main__":
    # Small shapes consistent with the module's forward.
    B, num_in, num_out, n_steps = 8, 32, 64, 10

    key = jax.random.PRNGKey(0)
    kx, kt, kw, kb, ke = jax.random.split(key, 5)

    x = jax.random.normal(kx, (B, num_in), dtype=jnp.float32)
    t = jax.random.randint(kt, (B,), 0, n_steps, dtype=jnp.int32)

    # Deterministic parameter init (mirrors nn.Linear default + embed.uniform_()).
    bound = 1.0 / (num_in ** 0.5)
    lin_weight = jax.random.uniform(kw, (num_out, num_in), jnp.float32, -bound, bound)
    lin_bias = jax.random.uniform(kb, (num_out,), jnp.float32, -bound, bound)
    embed_weight = jax.random.uniform(ke, (n_steps, num_out), jnp.float32, 0.0, 1.0)

    # Pure-JAX reference.
    ref = embed_weight[t] * (x @ lin_weight.T + lin_bias)

    # f32 matmul path (tight check).
    w32, b32, e32 = prepare_params(lin_weight, lin_bias, embed_weight, jnp.float32)
    out32 = jax.block_until_ready(
        conditional_linear(x, t, w32, b32, e32, num_out=num_out))
    assert out32.shape == (B, num_out)
    assert jnp.allclose(out32, ref, atol=1e-5, rtol=1e-5), \
        float(jnp.max(jnp.abs(out32 - ref)))

    # bf16 matmul-input path (bandwidth optimization; f32 accumulate + f32
    # elementwise, v5e-safe).  Output kept f32 here for comparison.
    wbf, bbf, ebf = prepare_params(lin_weight, lin_bias, embed_weight, jnp.bfloat16)
    outbf = jax.block_until_ready(
        conditional_linear(x, t, wbf, bbf, ebf, num_out=num_out))
    assert outbf.shape == (B, num_out)
    assert jnp.allclose(outbf, ref, atol=5e-2, rtol=5e-2)

    print("KERNEL_OK")
</pallas_src>

<mosaic_0001>
module attributes {stable_mosaic.version = 11 : i64} {
  func.func @_cond_linear_kernel(%arg0: i32, %arg1: memref<16x1xi32, #tpu.memory_space<vmem>>, %arg2: memref<16x32xf32, #tpu.memory_space<vmem>>, %arg3: memref<32x128xf32, #tpu.memory_space<vmem>>, %arg4: memref<1x128xf32, #tpu.memory_space<vmem>>, %arg5: memref<16x128xf32, #tpu.memory_space<vmem>>, %arg6: memref<16x128xf32, #tpu.memory_space<vmem>>) attributes {dimension_semantics = [#tpu.dimension_semantics<parallel>], iteration_bounds = array<i64: 1>, scalar_prefetch = 0 : i64, scratch_operands = 0 : i64, tpu.core_type = #tpu.core_type<tc>, window_params = [{transform_indices = @transform_0, window_bounds = array<i64: 16, 1>}, {transform_indices = @transform_1, window_bounds = array<i64: 16, 32>}, {pipeline_mode = #tpu.pipeline_mode<synchronous>, transform_indices = @transform_2, window_bounds = array<i64: 32, 128>}, {pipeline_mode = #tpu.pipeline_mode<synchronous>, transform_indices = @transform_3, window_bounds = array<i64: 1, 128>}, {pipeline_mode = #tpu.pipeline_mode<synchronous>, transform_indices = @transform_4, window_bounds = array<i64: 16, 128>}, {transform_indices = @transform_5, window_bounds = array<i64: 16, 128>}]} {
    %0 = tpu.iota {dimensions = array<i32: 1>} : vector<16x16xi32>
    %c0 = arith.constant 0 : index
    %c0_0 = arith.constant 0 : index
    %1 = vector.load %arg1[%c0, %c0_0] : memref<16x1xi32, #tpu.memory_space<vmem>>, vector<16x1xi32>
    %2 = vector.broadcast %1 : vector<16x1xi32> to vector<16x16xi32>
    %3 = arith.cmpi eq, %2, %0 : vector<16x16xi32>
    %4 = arith.extui %3 : vector<16x16xi1> to vector<16x16xi32>
    %5 = arith.sitofp %4 : vector<16x16xi32> to vector<16x16xf32>
    %c0_1 = arith.constant 0 : index
    %c0_2 = arith.constant 0 : index
    %6 = vector.load %arg5[%c0_1, %c0_2] : memref<16x128xf32, #tpu.memory_space<vmem>>, vector<16x128xf32>
    %cst = arith.constant dense<0.000000e+00> : vector<16x128xf32>
    %7 = tpu.matmul %5, %6, %cst {dimension_numbers = #tpu.dot_dimension_numbers<[1], [0], [0], [1], [0, 0, 1, 1], [], []>} : vector<16x16xf32>, vector<16x128xf32>, vector<16x128xf32> -> vector<16x128xf32>
    %c0_3 = arith.constant 0 : index
    %c0_4 = arith.constant 0 : index
    %8 = vector.load %arg2[%c0_3, %c0_4] : memref<16x32xf32, #tpu.memory_space<vmem>>, vector<16x32xf32>
    %c0_5 = arith.constant 0 : index
    %c0_6 = arith.constant 0 : index
    %9 = vector.load %arg3[%c0_5, %c0_6] : memref<32x128xf32, #tpu.memory_space<vmem>>, vector<32x128xf32>
    %cst_7 = arith.constant dense<0.000000e+00> : vector<16x128xf32>
    %10 = tpu.matmul %8, %9, %cst_7 {dimension_numbers = #tpu.dot_dimension_numbers<[1], [0], [0], [1], [0, 0, 1, 1], [], []>} : vector<16x32xf32>, vector<32x128xf32>, vector<16x128xf32> -> vector<16x128xf32>
    %c0_8 = arith.constant 0 : index
    %c0_9 = arith.constant 0 : index
    %11 = vector.load %arg4[%c0_8, %c0_9] : memref<1x128xf32, #tpu.memory_space<vmem>>, vector<1x128xf32>
    %12 = vector.broadcast %11 : vector<1x128xf32> to vector<16x128xf32>
    %13 = arith.addf %10, %12 : vector<16x128xf32>
    %14 = arith.mulf %7, %13 : vector<16x128xf32>
    %c0_10 = arith.constant 0 : index
    %c0_11 = arith.constant 0 : index
    %15 = vector.load %arg6[%c0_10, %c0_11] : memref<16x128xf32, #tpu.memory_space<vmem>>, vector<16x128xf32>
    tpu.vector_store %arg6[%c0_10, %c0_11], %14 {strides = array<i32>} : memref<16x128xf32, #tpu.memory_space<vmem>>, vector<16x128xf32>,
    return
  }
  func.func @transform_0(%arg0: i32) -> (i32, i32) {
    %c0_i32 = arith.constant 0 : i32
    %c0_i32_0 = arith.constant 0 : i32
    return %arg0, %c0_i32 : i32, i32
  }
  func.func @transform_1(%arg0: i32) -> (i32, i32) {
    %c0_i32 = arith.constant 0 : i32
    %c0_i32_0 = arith.constant 0 : i32
    return %arg0, %c0_i32 : i32, i32
  }
  func.func @transform_2(%arg0: i32) -> (i32, i32) {
    %c0_i32 = arith.constant 0 : i32
    %c0_i32_0 = arith.constant 0 : i32
    %c0_i32_1 = arith.constant 0 : i32
    return %c0_i32, %c0_i32_0 : i32, i32
  }
  func.func @transform_3(%arg0: i32) -> (i32, i32) {
    %c0_i32 = arith.constant 0 : i32
    %c0_i32_0 = arith.constant 0 : i32
    %c0_i32_1 = arith.constant 0 : i32
    return %c0_i32, %c0_i32_0 : i32, i32
  }
  func.func @transform_4(%arg0: i32) -> (i32, i32) {
    %c0_i32 = arith.constant 0 : i32
    %c0_i32_0 = arith.constant 0 : i32
    %c0_i32_1 = arith.constant 0 : i32
    return %c0_i32, %c0_i32_0 : i32, i32
  }
  func.func @transform_5(%arg0: i32) -> (i32, i32) {
    %c0_i32 = arith.constant 0 : i32
    %c0_i32_0 = arith.constant 0 : i32
    return %arg0, %c0_i32 : i32, i32
  }
}

</mosaic_0001>

<llo_original>
// kernel: conditional_linear.1
$region0: #{conditional_linear.1}
  #allocation0 [shape = 'u32[]', space=smem, size = 0x4, offset = 0x4, fixed_abs, tag = 'smem constant byte address 0x4 - core index']
  #allocation1 [shape = 'u32[144,128]{1,0:T(1,128)}', space=vmem, size = 0x12000, scoped, tag = 'internal scratch']
  %s0 = inlined_call_operand.vmem [shape: s32[16,1], index: 0, kind: input, shape index: {}]
  %s1 = inlined_call_operand.vmem [shape: f32[16,32], index: 1, kind: input, shape index: {}]
  %s2 = inlined_call_operand.vmem [shape: f32[32,128], index: 2, kind: input, shape index: {}]
  %s3 = inlined_call_operand.vmem [shape: f32[1,128], index: 3, kind: input, shape index: {}]
  %s4 = inlined_call_operand.vmem [shape: f32[16,128], index: 4, kind: input, shape index: {}]
  %s5 = inlined_call_operand.vmem [shape: f32[16,128], index: 5, kind: output, shape index: {}]
  %s6 = sld [smem:[#allocation0]]
  $region30: #{conditional_linear.1} parent=0
    _
  %s8 = ssub.s32 1, %s6
  %s9 = scalar_select 0, %s8, %s6
  // Predicated region
  $region2: #{conditional_linear.1} parent=0 // pred_check
    _
  $region3: #{conditional_linear.1} parent=0 // pred_check_branch
    %11 = sbr.rel (0) target = $region5
  $region4: #{conditional_linear.1} parent=0 // pred_region
    _
  $region5: #{conditional_linear.1} parent=0 // pred_fallthru
    _
  // Predicated region
  $region6: #{conditional_linear.1} parent=0 // pred_check
    _
  $region7: #{conditional_linear.1} parent=0 // pred_check_branch
    %13 = sbr.rel (0) target = $region9
  $region8: #{conditional_linear.1} parent=0 // pred_region
    _
  $region9: #{conditional_linear.1} parent=0 // pred_fallthru
    _
  // Predicated region
  $region10: #{conditional_linear.1} parent=0 // pred_check
    _
  $region11: #{conditional_linear.1} parent=0 // pred_check_branch
    %15 = sbr.rel (0) target = $region13
  $region12: #{conditional_linear.1} parent=0 // pred_region
    _
  $region13: #{conditional_linear.1} parent=0 // pred_fallthru
    _
  // Predicated region
  $region14: #{conditional_linear.1} parent=0 // pred_check
    _
  $region15: #{conditional_linear.1} parent=0 // pred_check_branch
    %17 = sbr.rel (0) target = $region17
  $region16: #{conditional_linear.1} parent=0 // pred_region
    _
  $region17: #{conditional_linear.1} parent=0 // pred_fallthru
    _
  // Predicated region
  $region18: #{conditional_linear.1} parent=0 // pred_check
    _
  $region19: #{conditional_linear.1} parent=0 // pred_check_branch
    %19 = sbr.rel (0) target = $region21
  $region20: #{conditional_linear.1} parent=0 // pred_region
    _
  $region21: #{conditional_linear.1} parent=0 // pred_fallthru
    _
  %v20 = vlaneseq
  %v21 = vand.u32 %v20, 127
  %v22 = vld [vmem:[%s0] sm:$0xff]
  %v23 = vld [vmem:[%s0 + $0x8] sm:$0xff]
  %24 = vset.pattern.permute.xlu0 0
  %25 = vperm.xlu0 %24, %v22
  %v26 = vpop.permute.xlu0 %25
  %27 = vset.pattern.permute.xlu0 0
  %28 = vperm.xlu0 %27, %v23
  %v29 = vpop.permute.xlu0 %28
  %vm30 = vcmp.eq.s32.totalorder %v26, %v21
  %vm31 = vcmp.eq.s32.totalorder %v29, %v21
  %v32 = vsel %vm30, 1, 0
  %v33 = vsel %vm31, 1, 0
  %v34 = vcvt.s32.f32 %v32
  %v35 = vcvt.s32.f32 %v33
  %v36 = vld [vmem:[%s4] sm:$0xff]
  %v37 = vld [vmem:[%s4 + $0x8] sm:$0xff]
  %vm38 = vcmask 130048
  %v40 = vsel %vm38, %v34, 0
  %v43 = vsel %vm38, %v35, 0
  %45 = vmatprep.subr.mxu0 0.0
  %46 = vmatpush1.msra.mxu0 %v36
  %47 = vmatprep.subr.mxu0 0.0
  %48 = vmatpush1.msra.mxu0 %v37
  %49 = vmatprep.subr.mxu0 0.0
  %50 = vmatpush1.msra.mxu0 0.0
  %51 = vmatprep.subr.mxu0 0.0
  %52 = vmatpush1.msra.mxu0 0.0
  %53 = vmatprep.subr.mxu0 0.0
  %54 = vmatpush1.msra.mxu0 0.0
  %55 = vmatprep.subr.mxu0 0.0
  %56 = vmatpush1.msra.mxu0 0.0
  %57 = vmatprep.subr.mxu0 0.0
  %58 = vmatpush1.msra.mxu0 0.0
  %59 = vmatprep.subr.mxu0 0.0
  %60 = vmatpush1.msra.mxu0 0.0
  %61 = vmatprep.subr.mxu0 0.0
  %62 = vmatpush1.msra.mxu0 0.0
  %63 = vmatprep.subr.mxu0 0.0
  %64 = vmatpush1.msra.mxu0 0.0
  %65 = vmatprep.subr.mxu0 0.0
  %66 = vmatpush1.msra.mxu0 0.0
  %67 = vmatprep.subr.mxu0 0.0
  %68 = vmatpush1.msra.mxu0 0.0
  %69 = vmatprep.subr.mxu0 0.0
  %70 = vmatpush1.msra.mxu0 0.0
  %71 = vmatprep.subr.mxu0 0.0
  %72 = vmatpush1.msra.mxu0 0.0
  %73 = vmatprep.subr.mxu0 0.0
  %74 = vmatpush1.msra.mxu0 0.0
  %75 = vmatprep.subr.mxu0 0.0
  %76 = vmatpush1.msra.mxu0 0.0
  %77 = vmatprep.subr.mxu0 0.0
  %78 = vmatpush1.msra.mxu0 0.0
  %79 = vmatprep.subr.mxu0 0.0
  %80 = vmatpush1.msra.mxu0 0.0
  %81 = vmatprep.subr.mxu0 0.0
  %82 = vmatpush1.msra.mxu0 0.0
  %83 = vmatprep.subr.mxu0 0.0
  %84 = vmatpush1.msra.mxu0 0.0
  %85 = vmatprep.subr.mxu0 0.0
  %86 = vmatpush1.msra.mxu0 0.0
  %87 = vmatprep.subr.mxu0 0.0
  %88 = vmatpush1.msra.mxu0 0.0
  %89 = vmatprep.subr.mxu0 0.0
  %90 = vmatpush1.msra.mxu0 0.0
  %91 = vmatprep.subr.mxu0 0.0
  %92 = vmatpush1.msra.mxu0 0.0
  %93 = vmatprep.subr.mxu0 0.0
  %94 = vmatpush1.msra.mxu0 0.0
  %95 = vmatprep.subr.mxu0 0.0
  %96 = vmatpush1.msra.mxu0 0.0
  %97 = vmatprep.subr.mxu0 0.0
  %98 = vmatpush1.msra.mxu0 0.0
  %99 = vmatprep.subr.mxu0 0.0
  %100 = vmatpush1.msra.mxu0 0.0
  %101 = vmatprep.subr.mxu0 0.0
  %102 = vmatpush1.msra.mxu0 0.0
  %103 = vmatprep.subr.mxu0 0.0
  %104 = vmatpush1.msra.mxu0 0.0
  %105 = vmatprep.subr.mxu0 0.0
  %106 = vmatpush1.msra.mxu0 0.0
  %107 = vmatprep.subr.mxu0 0.0
  %108 = vmatpush1.msra.mxu0 0.0
  %109 = vmatprep.mubr.f32.mxu0 0.0
  %110 = vmatmul.mubr.f32.gmra.mrb[0].mxu0 %v40
  %v111 = vpop.f32.mrb[0].mxu0
  %v112 = vadd.f32 0.0, %v111
  %v113 = vpop.f32.mrb[0].mxu0
  %114 = vmatprep.mubr.f32.mxu0 0.0
  %115 = vmatmul.mubr.f32.gmra.mrb[0].mxu0 %v43
  %v116 = vpop.f32.mrb[0].mxu0
  %v117 = vadd.f32 0.0, %v116
  %v118 = vpop.f32.mrb[0].mxu0
  %119 = vdwg.mxu0
  %v120 = vld [vmem:[%s1] sm:$0xff]
  %v121 = vld [vmem:[%s1 + $0x8] sm:$0xff]
  %v122 = vld [vmem:[%s2] sm:$0xff]
  %v123 = vld [vmem:[%s2 + $0x8] sm:$0xff]
  %v124 = vld [vmem:[%s2 + $0x10] sm:$0xff]
  %v125 = vld [vmem:[%s2 + $0x18] sm:$0xff]
  %v126 = vld [vmem:[%s3] sm:$0x1]
  %v128 = vlaneseq
  %v129 = vshrl.u32 %v128, 7
  %v130 = vsub.s32 0, %v129
  %v131 = vrot.slane %v126, %v130
  %vm133 = vcmask 261120
  %v135 = vsel %vm133, %v120, 0
  %v138 = vsel %vm133, %v121, 0
  %140 = vmatprep.subr.mxu0 0.0
  %141 = vmatpush1.msra.mxu0 %v122
  %142 = vmatprep.subr.mxu0 0.0
  %143 = vmatpush1.msra.mxu0 %v123
  %144 = vmatprep.subr.mxu0 0.0
  %145 = vmatpush1.msra.mxu0 %v124
  %146 = vmatprep.subr.mxu0 0.0
  %147 = vmatpush1.msra.mxu0 %v125
  %148 = vmatprep.subr.mxu0 0.0
  %149 = vmatpush1.msra.mxu0 0.0
  %150 = vmatprep.subr.mxu0 0.0
  %151 = vmatpush1.msra.mxu0 0.0
  %152 = vmatprep.subr.mxu0 0.0
  %153 = vmatpush1.msra.mxu0 0.0
  %154 = vmatprep.subr.mxu0 0.0
  %155 = vmatpush1.msra.mxu0 0.0
  %156 = vmatprep.subr.mxu0 0.0
  %157 = vmatpush1.msra.mxu0 0.0
  %158 = vmatprep.subr.mxu0 0.0
  %159 = vmatpush1.msra.mxu0 0.0
  %160 = vmatprep.subr.mxu0 0.0
  %161 = vmatpush1.msra.mxu0 0.0
  %162 = vmatprep.subr.mxu0 0.0
  %163 = vmatpush1.msra.mxu0 0.0
  %164 = vmatprep.subr.mxu0 0.0
  %165 = vmatpush1.msra.mxu0 0.0
  %166 = vmatprep.subr.mxu0 0.0
  %167 = vmatpush1.msra.mxu0 0.0
  %168 = vmatprep.subr.mxu0 0.0
  %169 = vmatpush1.msra.mxu0 0.0
  %170 = vmatprep.subr.mxu0 0.0
  %171 = vmatpush1.msra.mxu0 0.0
  %172 = vmatprep.subr.mxu0 0.0
  %173 = vmatpush1.msra.mxu0 0.0
  %174 = vmatprep.subr.mxu0 0.0
  %175 = vmatpush1.msra.mxu0 0.0
  %176 = vmatprep.subr.mxu0 0.0
  %177 = vmatpush1.msra.mxu0 0.0
  %178 = vmatprep.subr.mxu0 0.0
  %179 = vmatpush1.msra.mxu0 0.0
  %180 = vmatprep.subr.mxu0 0.0
  %181 = vmatpush1.msra.mxu0 0.0
  %182 = vmatprep.subr.mxu0 0.0
  %183 = vmatpush1.msra.mxu0 0.0
  %184 = vmatprep.subr.mxu0 0.0
  %185 = vmatpush1.msra.mxu0 0.0
  %186 = vmatprep.subr.mxu0 0.0
  %187 = vmatpush1.msra.mxu0 0.0
  %188 = vmatprep.subr.mxu0 0.0
  %189 = vmatpush1.msra.mxu0 0.0
  %190 = vmatprep.subr.mxu0 0.0
  %191 = vmatpush1.msra.mxu0 0.0
  %192 = vmatprep.subr.mxu0 0.0
  %193 = vmatpush1.msra.mxu0 0.0
  %194 = vmatprep.subr.mxu0 0.0
  %195 = vmatpush1.msra.mxu0 0.0
  %196 = vmatprep.subr.mxu0 0.0
  %197 = vmatpush1.msra.mxu0 0.0
  %198 = vmatprep.subr.mxu0 0.0
  %199 = vmatpush1.msra.mxu0 0.0
  %200 = vmatprep.subr.mxu0 0.0
  %201 = vmatpush1.msra.mxu0 0.0
  %202 = vmatprep.subr.mxu0 0.0
  %203 = vmatpush1.msra.mxu0 0.0
  %204 = vmatprep.mubr.f32.mxu0 0.0
  %205 = vmatmul.mubr.f32.gmra.mrb[0].mxu0 %v135
  %v206 = vpop.f32.mrb[0].mxu0
  %v207 = vadd.f32 %v131, %v206
  %v208 = vpop.f32.mrb[0].mxu0
  %209 = vmatprep.mubr.f32.mxu0 0.0
  %210 = vmatmul.mubr.f32.gmra.mrb[0].mxu0 %v138
  %v211 = vpop.f32.mrb[0].mxu0
  %v212 = vadd.f32 %v131, %v211
  %v213 = vpop.f32.mrb[0].mxu0
  %214 = vdwg.mxu0
  %v215 = vmul.f32 %v112, %v207
  %v216 = vmul.f32 %v117, %v212
  %217 = vst [vmem:[%s5] sm:$0xff] %v215
  %218 = vst [vmem:[%s5 + $0x8] sm:$0xff] %v216
  // Predicated region
  $region22: #{conditional_linear.1} parent=0 // pred_check
    _
  $region23: #{conditional_linear.1} parent=0 // pred_check_branch
    %220 = sbr.rel (0) target = $region25
  $region24: #{conditional_linear.1} parent=0 // pred_region
    _
  $region25: #{conditional_linear.1} parent=0 // pred_fallthru
    _
  // Predicated region
  $region26: #{conditional_linear.1} parent=0 // pred_check
    _
  $region27: #{conditional_linear.1} parent=0 // pred_check_branch
    %222 = sbr.rel (0) target = $region29
  $region28: #{conditional_linear.1} parent=0 // pred_region
    _
  $region29: #{conditional_linear.1} parent=0 // pred_fallthru
    _

</llo_original>
